<compile_context>
chip_gen: v7x
topology: tpu7x:2x2x1
jax: 0.10.0
libtpu: 0.0.40
codegen_flags: <defaults>
</compile_context>

<pallas_src>
import functools

import jax
import jax.numpy as jnp
import numpy as np
from jax.experimental import pallas as pl
from jax.experimental.pallas import tpu as pltpu

BN_EPS = 1e-5


def _basic_block_kernel(x_ref, w1_ref, b1_ref, w2_ref, b2_ref, o_ref, stage_ref,
                        *, Hp, WC):
    """One image per grid step.

    x_ref    : (1, Hp, 2*WC) f32   pair-row activation (also the residual)
    w{1,2}   : (4*WC, 2*WC)  bf16  pair-banded conv weights (BN scale folded in)
    b{1,2}   : (1, 2*WC)     f32   folded BN shift
    o_ref    : (1, Hp, 2*WC) f32   output (128-lane dense)
    stage_ref: (Hp, 4*WC)    bf16  K-concat staging buffer (reused by both convs)
    """
    x = x_ref[0]                                          # (Hp, 2*WC) f32

    # Zero only the two vertical-halo strips (row -1 for the first pair, row H
    # for the last pair); every other stage element is fully overwritten below.
    stage_ref[0:1, 0:WC] = jnp.zeros((1, WC), jnp.bfloat16)
    stage_ref[Hp - 1:Hp, 3 * WC:4 * WC] = jnp.zeros((1, WC), jnp.bfloat16)

    def stage(act):                                       # act: (Hp, 2*WC) bf16
        stage_ref[:, WC:3 * WC] = act                     # rows 2p and 2p+1
        stage_ref[1:, 0:WC] = act[:-1, WC:2 * WC]         # row 2p-1 (p >= 1)
        stage_ref[:-1, 3 * WC:4 * WC] = act[1:, 0:WC]     # row 2p+2 (p < Hp-1)

    # conv1 (BN1 scale folded into the weights) -> + shift -> ReLU
    stage(x.astype(jnp.bfloat16))
    mid = jnp.dot(stage_ref[...], w1_ref[...], preferred_element_type=jnp.float32)
    mid = jnp.maximum(mid + b1_ref[...], 0.0)

    # conv2 -> + shift -> residual add -> ReLU
    stage(mid.astype(jnp.bfloat16))
    out = jnp.dot(stage_ref[...], w2_ref[...], preferred_element_type=jnp.float32)
    o_ref[0] = jnp.maximum(out + b2_ref[...] + x, 0.0).astype(o_ref.dtype)


def _pair_banded_weights(w_oihw, scale, W):
    """OIHW 3x3 weights + per-channel BN scale -> (4*W*Cin, 2*W*Cout) bf16 band.

    Row index    = s*W*Cin  + p*Cin  + ci   (s = input-row slot within the pair window)
    Column index = r*W*Cout + x*Cout + co   (r = output row within the pair)
    Entry        = w[co, ci, kh=s-r, kw=p-x+1] * scale[co] when both taps in range, else 0.
    Encodes the 3 horizontal taps + horizontal zero padding of a stride-1 pad-1 conv.
    """
    Cout, Cin, KH, KW = w_oihw.shape
    WCi, WCo = W * Cin, W * Cout
    w_t = jnp.transpose(w_oihw, (2, 3, 1, 0))             # (KH, KW, Cin, Cout)
    p = jnp.arange(W)[:, None]                            # input column
    xq = jnp.arange(W)[None, :]                           # output column
    dx = p - xq + 1
    valid = ((dx >= 0) & (dx < KW)).astype(w_t.dtype)
    band = w_t[:, jnp.clip(dx, 0, KW - 1)]                # (KH, W, W, Cin, Cout)
    band = band * valid[None, :, :, None, None]
    band = jnp.transpose(band, (0, 1, 3, 2, 4)).reshape(KH, WCi, WCo)
    band = band * jnp.tile(scale, W)[None, None, :]       # fold BN scale into columns
    wpair = jnp.zeros((4 * WCi, 2 * WCo), jnp.float32)
    for r in range(2):                                    # output row within the pair
        for kh in range(KH):                              # vertical tap
            s = r + kh                                    # input-row slot
            wpair = wpair.at[s * WCi:(s + 1) * WCi,
                             r * WCo:(r + 1) * WCo].set(band[kh])
    return wpair.astype(jnp.bfloat16)


def basic_block_forward(x_nchw, w1_oihw, bn1, w2_oihw, bn2):
    """x_nchw: (N, C, H, W) float32.  Returns (N, C, H, W) float32."""
    N, C, H, W = x_nchw.shape
    assert H % 2 == 0, "pair-row layout requires even H"
    WC = W * C
    Hp = H // 2

    # NCHW -> NHWC -> fuse (2 rows, W, C) onto the lane axis.
    x = jnp.transpose(x_nchw, (0, 2, 3, 1)).reshape(N, Hp, 2 * WC)

    def fold_bn(gamma, beta, mean, var):
        scale = gamma / jnp.sqrt(var + BN_EPS)
        shift = beta - mean * scale
        return scale, jnp.tile(shift, 2 * W).reshape(1, 2 * WC)

    s1, b1 = fold_bn(*bn1)
    s2, b2 = fold_bn(*bn2)
    wp1 = _pair_banded_weights(w1_oihw, s1, W)
    wp2 = _pair_banded_weights(w2_oihw, s2, W)

    kernel = functools.partial(_basic_block_kernel, Hp=Hp, WC=WC)

    # Grid over images (independent -> "parallel"): keeps both v7x TensorCores
    # busy and restores DMA/compute pipelining across grid steps.
    # TODO(synk): at real ResNet widths (W*C >= 128*k), band over a W-tile with
    # Wt*Cin ~ 256 instead of the full (4*W*C, 2*W*C) band, and add a row-tile
    # grid axis with re-derived vmem_limit_bytes for v7x's 64 MiB VMEM.
    out = pl.pallas_call(
        kernel,
        out_shape=jax.ShapeDtypeStruct((N, Hp, 2 * WC), jnp.float32),
        grid=(N,),
        in_specs=[
            pl.BlockSpec((1, Hp, 2 * WC), lambda i: (i, 0, 0)),   # x / residual
            pl.BlockSpec((4 * WC, 2 * WC), lambda i: (0, 0)),     # conv1 band (BN1 scale folded)
            pl.BlockSpec((1, 2 * WC), lambda i: (0, 0)),          # BN1 shift
            pl.BlockSpec((4 * WC, 2 * WC), lambda i: (0, 0)),     # conv2 band (BN2 scale folded)
            pl.BlockSpec((1, 2 * WC), lambda i: (0, 0)),          # BN2 shift
        ],
        out_specs=pl.BlockSpec((1, Hp, 2 * WC), lambda i: (i, 0, 0)),
        scratch_shapes=[pltpu.VMEM((Hp, 4 * WC), jnp.bfloat16)],
        compiler_params=pltpu.CompilerParams(
            dimension_semantics=("parallel",)),
    )(x, wp1, b1, wp2, b2)

    # (N, H/2, 2*W*C) -> NCHW
    return jnp.transpose(out.reshape(N, H, W, C), (0, 3, 1, 2))


# ------------------------- pure-JAX reference -------------------------
def _reference(x_nchw, w1, bn1, w2, bn2):
    def conv(x, w):  # x NCHW, w OIHW
        return jax.lax.conv_general_dilated(
            x, w, window_strides=(1, 1), padding=((1, 1), (1, 1)),
            dimension_numbers=('NCHW', 'OIHW', 'NCHW'))

    def bn(x, p):
        g, b, m, v = p
        sh = (1, -1, 1, 1)
        return (x - m.reshape(sh)) / jnp.sqrt(v.reshape(sh) + BN_EPS) \
            * g.reshape(sh) + b.reshape(sh)

    out = jax.nn.relu(bn(conv(x_nchw, w1), bn1))
    out = bn(conv(out, w2), bn2)
    return jax.nn.relu(out + x_nchw)


if __name__ == "__main__":
    # Small shapes: inplanes = planes = 4, stride=1, downsample=None.
    N, C, H, W = 2, 4, 16, 16
    key = jax.random.PRNGKey(0)
    ks = jax.random.split(key, 12)

    x = jax.random.normal(ks[0], (N, C, H, W), jnp.float32)

    # conv weights (Kaiming-ish scale), OIHW, no bias.
    fan_in = C * 3 * 3
    std = (2.0 / fan_in) ** 0.5
    w1 = jax.random.normal(ks[1], (C, C, 3, 3), jnp.float32) * std
    w2 = jax.random.normal(ks[2], (C, C, 3, 3), jnp.float32) * std

    # BatchNorm params (inference-mode running stats), non-trivial values.
    bn1 = (1.0 + 0.1 * jax.random.normal(ks[3], (C,), jnp.float32),   # gamma
           0.1 * jax.random.normal(ks[4], (C,), jnp.float32),         # beta
           0.1 * jax.random.normal(ks[5], (C,), jnp.float32),         # mean
           1.0 + 0.1 * jax.random.uniform(ks[6], (C,), jnp.float32))  # var
    bn2 = (1.0 + 0.1 * jax.random.normal(ks[7], (C,), jnp.float32),
           0.1 * jax.random.normal(ks[8], (C,), jnp.float32),
           0.1 * jax.random.normal(ks[9], (C,), jnp.float32),
           1.0 + 0.1 * jax.random.uniform(ks[10], (C,), jnp.float32))

    y = basic_block_forward(x, w1, bn1, w2, bn2)
    y = jax.block_until_ready(y)

    y_ref = jax.block_until_ready(_reference(x, w1, bn1, w2, bn2))
    # Tolerance accounts for bf16 MXU operands (and BN-scale-folded bf16
    # weights) in the kernel vs. the f32 reference.
    np.testing.assert_allclose(np.asarray(y), np.asarray(y_ref),
                               rtol=5e-2, atol=5e-2)
    print("KERNEL_OK")
</pallas_src>

<mosaic_0001>
module attributes {stable_mosaic.version = 11 : i64} {
  func.func @_basic_block_kernel(%arg0: i32, %arg1: memref<1x8x128xf32, #tpu.memory_space<vmem>>, %arg2: memref<256x128xbf16, #tpu.memory_space<vmem>>, %arg3: memref<1x128xf32, #tpu.memory_space<vmem>>, %arg4: memref<256x128xbf16, #tpu.memory_space<vmem>>, %arg5: memref<1x128xf32, #tpu.memory_space<vmem>>, %arg6: memref<1x8x128xf32, #tpu.memory_space<vmem>>, %arg7: memref<8x256xbf16, #tpu.memory_space<vmem>>) attributes {dimension_semantics = [#tpu.dimension_semantics<parallel>], iteration_bounds = array<i64: 2>, scalar_prefetch = 0 : i64, scratch_operands = 1 : i64, tpu.core_type = #tpu.core_type<tc>, window_params = [{transform_indices = @transform_0, window_bounds = array<i64: 1, 8, 128>}, {pipeline_mode = #tpu.pipeline_mode<synchronous>, transform_indices = @transform_1, window_bounds = array<i64: 256, 128>}, {pipeline_mode = #tpu.pipeline_mode<synchronous>, transform_indices = @transform_2, window_bounds = array<i64: 1, 128>}, {pipeline_mode = #tpu.pipeline_mode<synchronous>, transform_indices = @transform_3, window_bounds = array<i64: 256, 128>}, {pipeline_mode = #tpu.pipeline_mode<synchronous>, transform_indices = @transform_4, window_bounds = array<i64: 1, 128>}, {transform_indices = @transform_5, window_bounds = array<i64: 1, 8, 128>}]} {
    %c0 = arith.constant 0 : index
    %c0_0 = arith.constant 0 : index
    %c0_1 = arith.constant 0 : index
    %0 = vector.load %arg1[%c0, %c0_0, %c0_1] : memref<1x8x128xf32, #tpu.memory_space<vmem>>, vector<1x8x128xf32>
    %1 = vector.shape_cast %0 : vector<1x8x128xf32> to vector<8x128xf32>
    %cst = arith.constant 0.000000e+00 : bf16
    %2 = vector.broadcast %cst : bf16 to vector<1x64xbf16>
    %c0_2 = arith.constant 0 : index
    %c0_3 = arith.constant 0 : index
    %3 = vector.load %arg7[%c0_2, %c0_3] : memref<8x256xbf16, #tpu.memory_space<vmem>>, vector<1x64xbf16>
    tpu.vector_store %arg7[%c0_2, %c0_3], %2 {strides = array<i32>} : memref<8x256xbf16, #tpu.memory_space<vmem>>, vector<1x64xbf16>,
    %cst_4 = arith.constant 0.000000e+00 : bf16
    %4 = vector.broadcast %cst_4 : bf16 to vector<1x64xbf16>
    %c7 = arith.constant 7 : index
    %c192 = arith.constant 192 : index
    %5 = vector.load %arg7[%c7, %c192] : memref<8x256xbf16, #tpu.memory_space<vmem>>, vector<1x64xbf16>
    tpu.vector_store %arg7[%c7, %c192], %4 {strides = array<i32>} : memref<8x256xbf16, #tpu.memory_space<vmem>>, vector<1x64xbf16>,
    %6 = arith.truncf %1 : vector<8x128xf32> to vector<8x128xbf16>
    %c0_5 = arith.constant 0 : index
    %c64 = arith.constant 64 : index
    %7 = vector.load %arg7[%c0_5, %c64] : memref<8x256xbf16, #tpu.memory_space<vmem>>, vector<8x128xbf16>
    tpu.vector_store %arg7[%c0_5, %c64], %6 {strides = array<i32>} : memref<8x256xbf16, #tpu.memory_space<vmem>>, vector<8x128xbf16>,
    %8 = vector.extract_strided_slice %6 {offsets = [0, 64], sizes = [7, 64], strides = [1, 1]} : vector<8x128xbf16> to vector<7x64xbf16>
    %c1 = arith.constant 1 : index
    %c0_6 = arith.constant 0 : index
    %9 = vector.load %arg7[%c1, %c0_6] : memref<8x256xbf16, #tpu.memory_space<vmem>>, vector<7x64xbf16>
    tpu.vector_store %arg7[%c1, %c0_6], %8 {strides = array<i32>} : memref<8x256xbf16, #tpu.memory_space<vmem>>, vector<7x64xbf16>,
    %10 = vector.extract_strided_slice %6 {offsets = [1, 0], sizes = [7, 64], strides = [1, 1]} : vector<8x128xbf16> to vector<7x64xbf16>
    %c0_7 = arith.constant 0 : index
    %c192_8 = arith.constant 192 : index
    %11 = vector.load %arg7[%c0_7, %c192_8] : memref<8x256xbf16, #tpu.memory_space<vmem>>, vector<7x64xbf16>
    tpu.vector_store %arg7[%c0_7, %c192_8], %10 {strides = array<i32>} : memref<8x256xbf16, #tpu.memory_space<vmem>>, vector<7x64xbf16>,
    %c0_9 = arith.constant 0 : index
    %c0_10 = arith.constant 0 : index
    %12 = vector.load %arg7[%c0_9, %c0_10] : memref<8x256xbf16, #tpu.memory_space<vmem>>, vector<8x256xbf16>
    %c0_11 = arith.constant 0 : index
    %c0_12 = arith.constant 0 : index
    %13 = vector.load %arg2[%c0_11, %c0_12] : memref<256x128xbf16, #tpu.memory_space<vmem>>, vector<256x128xbf16>
    %cst_13 = arith.constant dense<0.000000e+00> : vector<8x128xf32>
    %14 = tpu.matmul %12, %13, %cst_13 {dimension_numbers = #tpu.dot_dimension_numbers<[1], [0], [0], [1], [0, 0, 1, 1], [], []>} : vector<8x256xbf16>, vector<256x128xbf16>, vector<8x128xf32> -> vector<8x128xf32>
    %c0_14 = arith.constant 0 : index
    %c0_15 = arith.constant 0 : index
    %15 = vector.load %arg3[%c0_14, %c0_15] : memref<1x128xf32, #tpu.memory_space<vmem>>, vector<1x128xf32>
    %16 = vector.broadcast %15 : vector<1x128xf32> to vector<8x128xf32>
    %17 = arith.addf %14, %16 : vector<8x128xf32>
    %cst_16 = arith.constant 0.000000e+00 : f32
    %18 = vector.broadcast %cst_16 : f32 to vector<8x128xf32>
    %19 = arith.maximumf %17, %18 : vector<8x128xf32>
    %20 = arith.truncf %19 : vector<8x128xf32> to vector<8x128xbf16>
    %c0_17 = arith.constant 0 : index
    %c64_18 = arith.constant 64 : index
    %21 = vector.load %arg7[%c0_17, %c64_18] : memref<8x256xbf16, #tpu.memory_space<vmem>>, vector<8x128xbf16>
    tpu.vector_store %arg7[%c0_17, %c64_18], %20 {strides = array<i32>} : memref<8x256xbf16, #tpu.memory_space<vmem>>, vector<8x128xbf16>,
    %22 = vector.extract_strided_slice %20 {offsets = [0, 64], sizes = [7, 64], strides = [1, 1]} : vector<8x128xbf16> to vector<7x64xbf16>
    %c1_19 = arith.constant 1 : index
    %c0_20 = arith.constant 0 : index
    %23 = vector.load %arg7[%c1_19, %c0_20] : memref<8x256xbf16, #tpu.memory_space<vmem>>, vector<7x64xbf16>
    tpu.vector_store %arg7[%c1_19, %c0_20], %22 {strides = array<i32>} : memref<8x256xbf16, #tpu.memory_space<vmem>>, vector<7x64xbf16>,
    %24 = vector.extract_strided_slice %20 {offsets = [1, 0], sizes = [7, 64], strides = [1, 1]} : vector<8x128xbf16> to vector<7x64xbf16>
    %c0_21 = arith.constant 0 : index
    %c192_22 = arith.constant 192 : index
    %25 = vector.load %arg7[%c0_21, %c192_22] : memref<8x256xbf16, #tpu.memory_space<vmem>>, vector<7x64xbf16>
    tpu.vector_store %arg7[%c0_21, %c192_22], %24 {strides = array<i32>} : memref<8x256xbf16, #tpu.memory_space<vmem>>, vector<7x64xbf16>,
    %c0_23 = arith.constant 0 : index
    %c0_24 = arith.constant 0 : index
    %26 = vector.load %arg7[%c0_23, %c0_24] : memref<8x256xbf16, #tpu.memory_space<vmem>>, vector<8x256xbf16>
    %c0_25 = arith.constant 0 : index
    %c0_26 = arith.constant 0 : index
    %27 = vector.load %arg4[%c0_25, %c0_26] : memref<256x128xbf16, #tpu.memory_space<vmem>>, vector<256x128xbf16>
    %cst_27 = arith.constant dense<0.000000e+00> : vector<8x128xf32>
    %28 = tpu.matmul %26, %27, %cst_27 {dimension_numbers = #tpu.dot_dimension_numbers<[1], [0], [0], [1], [0, 0, 1, 1], [], []>} : vector<8x256xbf16>, vector<256x128xbf16>, vector<8x128xf32> -> vector<8x128xf32>
    %c0_28 = arith.constant 0 : index
    %c0_29 = arith.constant 0 : index
    %29 = vector.load %arg5[%c0_28, %c0_29] : memref<1x128xf32, #tpu.memory_space<vmem>>, vector<1x128xf32>
    %30 = vector.broadcast %29 : vector<1x128xf32> to vector<8x128xf32>
    %31 = arith.addf %28, %30 : vector<8x128xf32>
    %32 = arith.addf %31, %1 : vector<8x128xf32>
    %cst_30 = arith.constant 0.000000e+00 : f32
    %33 = vector.broadcast %cst_30 : f32 to vector<8x128xf32>
    %34 = arith.maximumf %32, %33 : vector<8x128xf32>
    %c0_31 = arith.constant 0 : index
    %c0_32 = arith.constant 0 : index
    %c0_33 = arith.constant 0 : index
    %35 = vector.load %arg6[%c0_31, %c0_32, %c0_33] : memref<1x8x128xf32, #tpu.memory_space<vmem>>, vector<1x8x128xf32>
    %36 = vector.shape_cast %35 : vector<1x8x128xf32> to vector<8x128xf32>
    %37 = vector.shape_cast %34 : vector<8x128xf32> to vector<1x8x128xf32>
    tpu.vector_store %arg6[%c0_31, %c0_32, %c0_33], %37 {strides = array<i32>} : memref<1x8x128xf32, #tpu.memory_space<vmem>>, vector<1x8x128xf32>,
    return
  }
  func.func @transform_0(%arg0: i32) -> (i32, i32, i32) {
    %c0_i32 = arith.constant 0 : i32
    %c0_i32_0 = arith.constant 0 : i32
    %c0_i32_1 = arith.constant 0 : i32
    return %arg0, %c0_i32, %c0_i32_0 : i32, i32, i32
  }
  func.func @transform_1(%arg0: i32) -> (i32, i32) {
    %c0_i32 = arith.constant 0 : i32
    %c0_i32_0 = arith.constant 0 : i32
    %c0_i32_1 = arith.constant 0 : i32
    return %c0_i32, %c0_i32_0 : i32, i32
  }
  func.func @transform_2(%arg0: i32) -> (i32, i32) {
    %c0_i32 = arith.constant 0 : i32
    %c0_i32_0 = arith.constant 0 : i32
    %c0_i32_1 = arith.constant 0 : i32
    return %c0_i32, %c0_i32_0 : i32, i32
  }
  func.func @transform_3(%arg0: i32) -> (i32, i32) {
    %c0_i32 = arith.constant 0 : i32
    %c0_i32_0 = arith.constant 0 : i32
    %c0_i32_1 = arith.constant 0 : i32
    return %c0_i32, %c0_i32_0 : i32, i32
  }
  func.func @transform_4(%arg0: i32) -> (i32, i32) {
    %c0_i32 = arith.constant 0 : i32
    %c0_i32_0 = arith.constant 0 : i32
    %c0_i32_1 = arith.constant 0 : i32
    return %c0_i32, %c0_i32_0 : i32, i32
  }
  func.func @transform_5(%arg0: i32) -> (i32, i32, i32) {
    %c0_i32 = arith.constant 0 : i32
    %c0_i32_0 = arith.constant 0 : i32
    %c0_i32_1 = arith.constant 0 : i32
    return %arg0, %c0_i32, %c0_i32_0 : i32, i32, i32
  }
}

</mosaic_0001>

<llo_original>
// kernel: tpu_custom_call.1
$region0: #{tpu_custom_call.1}
  #allocation0 [shape = 'u32[]', space=smem, size = 0x4, offset = 0x4, fixed_abs, tag = 'smem constant byte address 0x4 - core index']
  #allocation1 [shape = 'u32[144,128]{1,0:T(1,128)}', space=vmem, size = 0x12000, scoped, tag = 'internal scratch']
  #allocation2 [shape = 'bf16[8,256]{1,0:T(8,128)(2,1)}', space=vmem, size = 0x1000, scoped, tag = 'scratch operand']
  %s0 = inlined_call_operand.hbm [shape: f32[2,8,128], index: 0, kind: input, shape index: {}]
  %s1 = inlined_call_operand.hbm [shape: bf16[256,128], index: 1, kind: input, shape index: {}]
  %s2 = inlined_call_operand.vmem [shape: f32[1,128], index: 2, kind: input, shape index: {}]
  %s3 = inlined_call_operand.hbm [shape: bf16[256,128], index: 3, kind: input, shape index: {}]
  %s4 = inlined_call_operand.vmem [shape: f32[1,128], index: 4, kind: input, shape index: {}]
  %s5 = inlined_call_operand.hbm [shape: f32[2,8,128], index: 5, kind: output, shape index: {}]
  %s6 = sld [smem:[#allocation0]]
  $region65: #{tpu_custom_call.1} parent=0
    _
  %s8 = ssub.s32 1, %s6
  %s9 = scalar_select 0, %s8, %s6
  $region1: #{tpu_custom_call.1} parent=0
    #allocation3 [shape = 'u8[8192]{0}', space=vmem, size = 0x2000, scoped, tag = 'input window, operand 0']
    #allocation4 [shape = 's32[2]{0}', space=sflag, size = 0x8, scoped, tag = 'scoped memory for tpu_custom_call.1']
    #allocation5 [shape = 's32[2]{0}', space=sflag, size = 0x8, scoped, tag = 'scoped memory for tpu_custom_call.1']
    #allocation6 [shape = 'u8[65536]{0}', space=vmem, size = 0x10000, scoped, tag = 'input window, operand 1, single buffered']
    #allocation7 [shape = 's32[1]{0}', space=sflag, size = 0x4, scoped, tag = 'scoped memory for tpu_custom_call.1']
    #allocation8 [shape = 'u8[65536]{0}', space=vmem, size = 0x10000, scoped, tag = 'input window, operand 3, single buffered']
    #allocation9 [shape = 'u8[8192]{0}', space=vmem, size = 0x2000, scoped, tag = 'output window, operand 0']
    %10 = vsyncpa [#allocation4], 0
    %s11 = scalar_lea.sflag [#allocation4], 1
    %12 = vsyncpa %s11, 0
    %13 = vsyncpa [#allocation7], 0
    %14 = vsyncpa [#allocation5], 0
    %s15 = scalar_lea.sflag [#allocation5], 1
    %16 = vsyncpa %s15, 0
    loop: start=0, step=1, limit=4
    $region2: #{tpu_custom_call.1} parent=1 // loop_pre_header
      _
    $region3: #{tpu_custom_call.1} parent=1 // loop_header
      %s18 = sphi 0, %s22
      %p19 = scmp.ge.s32.totalorder %s18, 4
      %s28 = sphi 0, %s30
      %s31 = sphi 0, %s28
      %s32 = sphi 0, %s31
      %s48 = sphi 0, %s32
      %s52 = sphi 0, %s52
      %s54 = sphi 0, %s52
      %s55 = sphi 0, %s54
      %s69 = sphi 0, %s55
      %s73 = sphi 0, %s73
      %s75 = sphi 0, %s73
      %s76 = sphi 0, %s75
      %s90 = sphi 0, %s76
      %s94 = sphi 0, %s94
      %s96 = sphi 0, %s94
      %s97 = sphi 0, %s96
      %s111 = sphi 0, %s97
      %s115 = sphi 0, %s115
      %s117 = sphi 0, %s115
      %s118 = sphi 0, %s117
      %s132 = sphi 0, %s118
      %s138 = sphi 0, %s140
      %s141 = sphi 0, %s138
      %s142 = sphi 0, %s141
      %s158 = sphi 0, %s142
    $region4: #{tpu_custom_call.1} parent=1 // loop_header_branch
      %21 = sbr.rel (%p19) target = $region8
    $region5: #{tpu_custom_call.1} parent=1 // loop_body
      %s23 = ssub.s32 %s18, 1
      %s24 = ssub.s32 %s18, 2
      %s25 = sadd.s32 %s18, 1
      %s26 = ssub.s32 %s18, %s25
      %p27 = scmp.eq.s32.totalorder %s26, 0
      %s29 = sadd.s32 %s28, 1
      %s30 = scalar_select %p27, %s28, %s29
      %p33 = pneg %p27
      %p34 = scmp.eq.s32.totalorder %s18, 1
      %p35 = por %p33, %p34
      %p36 = scmp.ne.s32.totalorder %s28, %s31
      %p37 = scmp.eq.s32.totalorder %s18, 0
      %p38 = por %p36, %p37
      %p39 = scmp.ne.s32.totalorder %s28, %s31
      %p40 = scmp.eq.s32.totalorder %s23, 1
      %p41 = por %p39, %p40
      %p42 = scmp.ne.s32.totalorder %s31, %s32
      %p43 = scmp.eq.s32.totalorder %s23, 0
      %p44 = por %p42, %p43
      %p45 = scmp.ne.s32.totalorder %s31, %s32
      %p46 = scmp.eq.s32.totalorder %s24, 1
      %p47 = por %p45, %p46
      %p49 = scmp.ne.s32.totalorder %s32, %s48
      %p50 = scmp.eq.s32.totalorder %s24, 0
      %p51 = por %p49, %p50
      %s53 = sadd.s32 %s52, 1
      %p56 = scmp.eq.s32.totalorder %s18, 1
      %p57 = scmp.ne.s32.totalorder %s52, %s54
      %p58 = scmp.eq.s32.totalorder %s18, 0
      %p59 = por %p57, %p58
      %p60 = scmp.ne.s32.totalorder %s52, %s54
      %p61 = scmp.eq.s32.totalorder %s23, 1
      %p62 = por %p60, %p61
      %p63 = scmp.ne.s32.totalorder %s54, %s55
      %p64 = scmp.eq.s32.totalorder %s23, 0
      %p65 = por %p63, %p64
      %p66 = scmp.ne.s32.totalorder %s54, %s55
      %p67 = scmp.eq.s32.totalorder %s24, 1
      %p68 = por %p66, %p67
      %p70 = scmp.ne.s32.totalorder %s55, %s69
      %p71 = scmp.eq.s32.totalorder %s24, 0
      %p72 = por %p70, %p71
      %s74 = sadd.s32 %s73, 1
      %p77 = scmp.eq.s32.totalorder %s18, 1
      %p78 = scmp.ne.s32.totalorder %s73, %s75
      %p79 = scmp.eq.s32.totalorder %s18, 0
      %p80 = por %p78, %p79
      %p81 = scmp.ne.s32.totalorder %s73, %s75
      %p82 = scmp.eq.s32.totalorder %s23, 1
      %p83 = por %p81, %p82
      %p84 = scmp.ne.s32.totalorder %s75, %s76
      %p85 = scmp.eq.s32.totalorder %s23, 0
      %p86 = por %p84, %p85
      %p87 = scmp.ne.s32.totalorder %s75, %s76
      %p88 = scmp.eq.s32.totalorder %s24, 1
      %p89 = por %p87, %p88
      %p91 = scmp.ne.s32.totalorder %s76, %s90
      %p92 = scmp.eq.s32.totalorder %s24, 0
      %p93 = por %p91, %p92
      %s95 = sadd.s32 %s94, 1
      %p98 = scmp.eq.s32.totalorder %s18, 1
      %p99 = scmp.ne.s32.totalorder %s94, %s96
      %p100 = scmp.eq.s32.totalorder %s18, 0
      %p101 = por %p99, %p100
      %p102 = scmp.ne.s32.totalorder %s94, %s96
      %p103 = scmp.eq.s32.totalorder %s23, 1
      %p104 = por %p102, %p103
      %p105 = scmp.ne.s32.totalorder %s96, %s97
      %p106 = scmp.eq.s32.totalorder %s23, 0
      %p107 = por %p105, %p106
      %p108 = scmp.ne.s32.totalorder %s96, %s97
      %p109 = scmp.eq.s32.totalorder %s24, 1
      %p110 = por %p108, %p109
      %p112 = scmp.ne.s32.totalorder %s97, %s111
      %p113 = scmp.eq.s32.totalorder %s24, 0
      %p114 = por %p112, %p113
      %s116 = sadd.s32 %s115, 1
      %p119 = scmp.eq.s32.totalorder %s18, 1
      %p120 = scmp.ne.s32.totalorder %s115, %s117
      %p121 = scmp.eq.s32.totalorder %s18, 0
      %p122 = por %p120, %p121
      %p123 = scmp.ne.s32.totalorder %s115, %s117
      %p124 = scmp.eq.s32.totalorder %s23, 1
      %p125 = por %p123, %p124
      %p126 = scmp.ne.s32.totalorder %s117, %s118
      %p127 = scmp.eq.s32.totalorder %s23, 0
      %p128 = por %p126, %p127
      %p129 = scmp.ne.s32.totalorder %s117, %s118
      %p130 = scmp.eq.s32.totalorder %s24, 1
      %p131 = por %p129, %p130
      %p133 = scmp.ne.s32.totalorder %s118, %s132
      %p134 = scmp.eq.s32.totalorder %s24, 0
      %p135 = por %p133, %p134
      %s136 = ssub.s32 %s18, %s25
      %p137 = scmp.eq.s32.totalorder %s136, 0
      %s139 = sadd.s32 %s138, 1
      %s140 = scalar_select %p137, %s138, %s139
      %p143 = pneg %p137
      %p144 = scmp.eq.s32.totalorder %s18, 1
      %p145 = por %p143, %p144
      %p146 = scmp.ne.s32.totalorder %s138, %s141
      %p147 = scmp.eq.s32.totalorder %s18, 0
      %p148 = por %p146, %p147
      %p149 = scmp.ne.s32.totalorder %s138, %s141
      %p150 = scmp.eq.s32.totalorder %s23, 1
      %p151 = por %p149, %p150
      %p152 = scmp.ne.s32.totalorder %s141, %s142
      %p153 = scmp.eq.s32.totalorder %s23, 0
      %p154 = por %p152, %p153
      %p155 = scmp.ne.s32.totalorder %s141, %s142
      %p156 = scmp.eq.s32.totalorder %s24, 1
      %p157 = por %p155, %p156
      %p159 = scmp.ne.s32.totalorder %s142, %s158
      %p160 = scmp.eq.s32.totalorder %s24, 0
      %p161 = por %p159, %p160
      %p162 = scmp.le.s32.totalorder 1, %s18
      %p163 = scmp.lt.s32.totalorder %s18, 3
      %p164 = pnand %p162, %p163
      %p165 = pneg %p164
      // Predicated region
      $region9: #{tpu_custom_call.1} parent=5 // pred_check
        _
      $region10: #{tpu_custom_call.1} parent=5 // pred_check_branch
        %167 = sbr.rel (%p164) target = $region12
      $region11: #{tpu_custom_call.1} parent=5 // pred_region
        %s168 = ssub.s32 %s18, 1
        // Predicated region
        $region13: #{tpu_custom_call.1} parent=11 // pred_check
          %p169 = pneg %p65
        $region14: #{tpu_custom_call.1} parent=11 // pred_check_branch
          %171 = sbr.rel (%p169) target = $region16
        $region15: #{tpu_custom_call.1} parent=11 // pred_region
          %s173 = ssub.s32 2048, 2048
          %174 = vsyncadd [#allocation7], %s173
          %s175 = sshll.u32 [#allocation6], 4
          %s176 = int_to_ptr.vmem [resolvable:$true] %s175
          %181 = dma.hbm_to_vmem [thread:$0]  %s1, 2048, %s176, [#allocation7], 64, 64, 4
        $region16: #{tpu_custom_call.1} parent=11 // pred_fallthru
          _
        // Predicated region
        $region17: #{tpu_custom_call.1} parent=11 // pred_check
          %p182 = pneg %p86
        $region18: #{tpu_custom_call.1} parent=11 // pred_check_branch
          %184 = sbr.rel (%p182) target = $region20
        $region19: #{tpu_custom_call.1} parent=11 // pred_region
          _
        $region20: #{tpu_custom_call.1} parent=11 // pred_fallthru
          _
        // Predicated region
        $region21: #{tpu_custom_call.1} parent=11 // pred_check
          %p185 = pneg %p107
        $region22: #{tpu_custom_call.1} parent=11 // pred_check_branch
          %187 = sbr.rel (%p185) target = $region24
        $region23: #{tpu_custom_call.1} parent=11 // pred_region
          %s189 = ssub.s32 2048, 2048
          %190 = vsyncadd [#allocation7], %s189
          %s191 = sshll.u32 [#allocation8], 4
          %s192 = int_to_ptr.vmem [resolvable:$true] %s191
          %197 = dma.hbm_to_vmem [thread:$0]  %s3, 2048, %s192, [#allocation7], 64, 64, 4
        $region24: #{tpu_custom_call.1} parent=11 // pred_fallthru
          _
        // Predicated region
        $region25: #{tpu_custom_call.1} parent=11 // pred_check
          %p198 = pneg %p128
        $region26: #{tpu_custom_call.1} parent=11 // pred_check_branch
          %200 = sbr.rel (%p198) target = $region28
        $region27: #{tpu_custom_call.1} parent=11 // pred_region
          _
        $region28: #{tpu_custom_call.1} parent=11 // pred_fallthru
          _
      $region12: #{tpu_custom_call.1} parent=5 // pred_fallthru
        _
      %p201 = scmp.lt.s32.totalorder %s18, 2
      // Predicated region
      $region29: #{tpu_custom_call.1} parent=5 // pred_check
        %p202 = pneg %p201
      $region30: #{tpu_custom_call.1} parent=5 // pred_check_branch
        %204 = sbr.rel (%p202) target = $region32
      $region31: #{tpu_custom_call.1} parent=5 // pred_region
        // Predicated region
        $region33: #{tpu_custom_call.1} parent=31 // pred_check
          %p205 = pneg %p38
        $region34: #{tpu_custom_call.1} parent=31 // pred_check_branch
          %207 = sbr.rel (%p205) target = $region36
        $region35: #{tpu_custom_call.1} parent=31 // pred_region
          %s208 = sand.u32 %s28, 1
          %s209 = scalar_lea.sflag [#allocation4], %s208
          %s210 = sand.u32 %s28, 1
          %s211 = smul.addr %s210, 8
          %s212 = scalar_lea.vmem [#allocation3], %s211
          %s214 = ssub.s32 128, 128
          %215 = vsyncadd %s209, %s214
          %s216 = smul.addr %s18, 128
          %s217 = scalar_lea.hbm %s0, %s216
          %s219 = sshll.u32 %s212, 4
          %s220 = int_to_ptr.vmem [resolvable:$true] %s219
          %222 = dma.hbm_to_vmem [thread:$0]  %s217, 128, %s220, %s209
        $region36: #{tpu_custom_call.1} parent=31 // pred_fallthru
          _
      $region32: #{tpu_custom_call.1} parent=5 // pred_fallthru
        _
      %p223 = scmp.le.s32.totalorder 1, %s18
      %p224 = scmp.lt.s32.totalorder %s18, 3
      %p225 = pnand %p223, %p224
      %p226 = pneg %p225
      // Predicated region
      $region37: #{tpu_custom_call.1} parent=5 // pred_check
        _
      $region38: #{tpu_custom_call.1} parent=5 // pred_check_branch
        %228 = sbr.rel (%p225) target = $region40
      $region39: #{tpu_custom_call.1} parent=5 // pred_region
        %s229 = ssub.s32 %s18, 1
        %s230 = sand.u32 %s31, 1
        %s231 = scalar_lea.sflag [#allocation4], %s230
        %s232 = sand.u32 %s31, 1
        %s233 = smul.addr %s232, 8
        %s234 = scalar_lea.vmem [#allocation3], %s233
        // Predicated region
        $region41: #{tpu_custom_call.1} parent=39 // pred_check
          %p235 = pneg %p44
        $region42: #{tpu_custom_call.1} parent=39 // pred_check_branch
          %237 = sbr.rel (%p235) target = $region44
        $region43: #{tpu_custom_call.1} parent=39 // pred_region
          %238 = dma.done %s231, 128
        $region44: #{tpu_custom_call.1} parent=39 // pred_fallthru
          _
        // Predicated region
        $region45: #{tpu_custom_call.1} parent=39 // pred_check
          %p239 = pneg %p65
        $region46: #{tpu_custom_call.1} parent=39 // pred_check_branch
          %241 = sbr.rel (%p239) target = $region48
        $region47: #{tpu_custom_call.1} parent=39 // pred_region
          %242 = dma.done [#allocation7], 2048
        $region48: #{tpu_custom_call.1} parent=39 // pred_fallthru
          _
        // Predicated region
        $region49: #{tpu_custom_call.1} parent=39 // pred_check
          %p243 = pneg %p107
        $region50: #{tpu_custom_call.1} parent=39 // pred_check_branch
          %245 = sbr.rel (%p243) target = $region52
        $region51: #{tpu_custom_call.1} parent=39 // pred_region
          %246 = dma.done [#allocation7], 2048
        $region52: #{tpu_custom_call.1} parent=39 // pred_fallthru
          _
        %s247 = sand.u32 %s31, 1
        %s248 = scalar_lea.sflag [#allocation4], %s247
        %s249 = sand.u32 %s31, 1
        %s250 = smul.addr %s249, 8
        %s251 = scalar_lea.vmem [#allocation3], %s250
        %p252 = pneg %p44
        %p253 = pneg %p41
        %p254 = pneg %p65
        %p255 = pneg %p62
        %p256 = pneg %p86
        %p257 = pneg %p83
        %p258 = pneg %p107
        %p259 = pneg %p104
        %p260 = pneg %p128
        %p261 = pneg %p125
        %p262 = pneg %p154
        %p263 = pneg %p151
        %s264 = sand.u32 %s141, 1
        %s265 = scalar_lea.sflag [#allocation5], %s264
        %s266 = sand.u32 %s141, 1
        %s267 = smul.addr %s266, 8
        %s268 = scalar_lea.vmem [#allocation9], %s267
        %v270 = vld [vmem:[%s234] sm:$0xff]
        %vm271 = vcmask 516096
        %vm272 = vsmask.f32 256
        %vm273 = vmand %vm271, %vm272
        %v274 = vld [vmem:[#allocation2] sm:$0x1]
        %v275 = vsel %vm273, 0, %v274
        %276 = vst [vmem:[#allocation2] sm:$0x1] %v275
        %vm277 = vcmask 1043971
        %vm278 = vsmask.f32 7950
        %vm279 = vmand %vm277, %vm278
        %v280 = vld [vmem:[#allocation2 + $0x4] sm:$0x8]
        %v281 = vsel %vm279, 0, %v280
        %282 = vst [vmem:[#allocation2 + $0x4] sm:$0x8] %v281
        %v283 = vpack.c.bf16 %v270, %v270
        %v285 = vunpack.c.l.b16 %v283
        %v286 = vpack.c.b16 %v285, %v285
        %287 = vrot.lane.b32.xlu0 %v286, 64
        %v288 = vpop.permute.xlu0 %287
        %v289 = vrot.slane %v288, 4
        %vm290 = vcmask 523264
        %v291 = vsel %vm290, %v289, %v288
        %vm293 = vcmask 1043968
        %vm294 = vcmask 523268
        %vm295 = vmor %vm294, %vm293
        %296 = vst.msk [vmem:[#allocation2] sm:$0xff] %vm295, %v291
        %v298 = vshrl.u32 %v286, 16
        %v300 = vrot.slane %v298, 7
        %v301 = vshll.u32 %v286, 16
        %v303 = vor.u32 %v300, %v301
        %304 = vrot.lane.b32.xlu0 %v303, 64
        %v305 = vpop.permute.xlu0 %304
        %vm307 = vcmask 519168
        %vm308 = vsmask.f32 7938
        %vm309 = vmand %vm307, %vm308
        %v310 = vld [vmem:[#allocation2] sm:$0xf]
        %v311 = vsel %vm309, %v305, %v310
        %312 = vst [vmem:[#allocation2] sm:$0xf] %v311
        %v313 = vrot.slane %v298, 4
        %v314 = vrot.slane %v301, 5
        %v315 = vor.u32 %v313, %v314
        %v316 = vrot.slane %v315, 4
        %317 = vrot.lane.b32.xlu0 %v316, 64
        %v318 = vpop.permute.xlu0 %317
        %vm320 = vcmask 1043968
        %vm321 = vsmask.f32 3328
        %vm322 = vmand %vm320, %vm321
        %v323 = vld [vmem:[#allocation2 + $0x4] sm:$0xf]
        %v324 = vsel %vm322, %v318, %v323
        %325 = vst [vmem:[#allocation2 + $0x4] sm:$0xf] %v324
        %v326 = vld [vmem:[#allocation2] sm:$0xff]
        %v327 = vld [vmem:[#allocation6] sm:$0xf]
        %v328 = vld [vmem:[#allocation6 + $0x4] sm:$0xf]
        %v329 = vld [vmem:[#allocation6 + $0x8] sm:$0xf]
        %v330 = vld [vmem:[#allocation6 + $0xc] sm:$0xf]
        %v331 = vld [vmem:[#allocation6 + $0x10] sm:$0xf]
        %v332 = vld [vmem:[#allocation6 + $0x14] sm:$0xf]
        %v333 = vld [vmem:[#allocation6 + $0x18] sm:$0xf]
        %v334 = vld [vmem:[#allocation6 + $0x1c] sm:$0xf]
        %v335 = vld [vmem:[#allocation6 + $0x20] sm:$0xf]
        %v336 = vld [vmem:[#allocation6 + $0x24] sm:$0xf]
        %v337 = vld [vmem:[#allocation6 + $0x28] sm:$0xf]
        %v338 = vld [vmem:[#allocation6 + $0x2c] sm:$0xf]
        %v339 = vld [vmem:[#allocation6 + $0x30] sm:$0xf]
        %v340 = vld [vmem:[#allocation6 + $0x34] sm:$0xf]
        %v341 = vld [vmem:[#allocation6 + $0x38] sm:$0xf]
        %v342 = vld [vmem:[#allocation6 + $0x3c] sm:$0xf]
        %v343 = vld [vmem:[#allocation6 + $0x40] sm:$0xf]
        %v344 = vld [vmem:[#allocation6 + $0x44] sm:$0xf]
        %v345 = vld [vmem:[#allocation6 + $0x48] sm:$0xf]
        %v346 = vld [vmem:[#allocation6 + $0x4c] sm:$0xf]
        %v347 = vld [vmem:[#allocation6 + $0x50] sm:$0xf]
        %v348 = vld [vmem:[#allocation6 + $0x54] sm:$0xf]
        %v349 = vld [vmem:[#allocation6 + $0x58] sm:$0xf]
        %v350 = vld [vmem:[#allocation6 + $0x5c] sm:$0xf]
        %v351 = vld [vmem:[#allocation6 + $0x60] sm:$0xf]
        %v352 = vld [vmem:[#allocation6 + $0x64] sm:$0xf]
        %v353 = vld [vmem:[#allocation6 + $0x68] sm:$0xf]
        %v354 = vld [vmem:[#allocation6 + $0x6c] sm:$0xf]
        %v355 = vld [vmem:[#allocation6 + $0x70] sm:$0xf]
        %v356 = vld [vmem:[#allocation6 + $0x74] sm:$0xf]
        %v357 = vld [vmem:[#allocation6 + $0x78] sm:$0xf]
        %v358 = vld [vmem:[#allocation6 + $0x7c] sm:$0xf]
        %v359 = vld [vmem:[%s2] sm:$0x1]
        %v361 = vlaneseq
        %v362 = vshrl.u32 %v361, 7
        %v363 = vsub.s32 0, %v362
        %v364 = vrot.slane %v359, %v363
        %v367 = vunpack.c.l.b16 %v326
        %v368 = vunpack.c.h.b16 %v326
        %v369 = vpack.c.b16 %v367, %v367
        %v370 = vpack.c.b16 %v368, %v368
        %v405 = vunpack.c.l.b16 %v327
        %v406 = vunpack.c.l.b16 %v328
        %v407 = vunpack.c.l.b16 %v329
        %v408 = vunpack.c.l.b16 %v330
        %v409 = vunpack.c.l.b16 %v331
        %v410 = vunpack.c.l.b16 %v332
        %v411 = vunpack.c.l.b16 %v333
        %v412 = vunpack.c.l.b16 %v334
        %v413 = vunpack.c.l.b16 %v335
        %v414 = vunpack.c.l.b16 %v336
        %v415 = vunpack.c.l.b16 %v337
        %v416 = vunpack.c.l.b16 %v338
        %v417 = vunpack.c.l.b16 %v339
        %v418 = vunpack.c.l.b16 %v340
        %v419 = vunpack.c.l.b16 %v341
        %v420 = vunpack.c.l.b16 %v342
        %v421 = vunpack.c.l.b16 %v343
        %v422 = vunpack.c.l.b16 %v344
        %v423 = vunpack.c.l.b16 %v345
        %v424 = vunpack.c.l.b16 %v346
        %v425 = vunpack.c.l.b16 %v347
        %v426 = vunpack.c.l.b16 %v348
        %v427 = vunpack.c.l.b16 %v349
        %v428 = vunpack.c.l.b16 %v350
        %v429 = vunpack.c.l.b16 %v351
        %v430 = vunpack.c.l.b16 %v352
        %v431 = vunpack.c.l.b16 %v353
        %v432 = vunpack.c.l.b16 %v354
        %v433 = vunpack.c.l.b16 %v355
        %v434 = vunpack.c.l.b16 %v356
        %v435 = vunpack.c.l.b16 %v357
        %v436 = vunpack.c.l.b16 %v358
        %v437 = vpack.c.b16 %v406, %v405
        %v438 = vpack.c.b16 %v408, %v407
        %v439 = vpack.c.b16 %v410, %v409
        %v440 = vpack.c.b16 %v412, %v411
        %v441 = vpack.c.b16 %v414, %v413
        %v442 = vpack.c.b16 %v416, %v415
        %v443 = vpack.c.b16 %v418, %v417
        %v444 = vpack.c.b16 %v420, %v419
        %v445 = vpack.c.b16 %v422, %v421
        %v446 = vpack.c.b16 %v424, %v423
        %v447 = vpack.c.b16 %v426, %v425
        %v448 = vpack.c.b16 %v428, %v427
        %v449 = vpack.c.b16 %v430, %v429
        %v450 = vpack.c.b16 %v432, %v431
        %v451 = vpack.c.b16 %v434, %v433
        %v452 = vpack.c.b16 %v436, %v435
        %469 = vmatprep.subr.bf16.mxu0 0
        %470 = vmatpush1.bf16.msra.mxu0 %v437
        %471 = vmatprep.subr.bf16.mxu0 0
        %472 = vmatpush1.bf16.msra.mxu0 %v438
        %473 = vmatprep.subr.bf16.mxu0 0
        %474 = vmatpush1.bf16.msra.mxu0 %v439
        %475 = vmatprep.subr.bf16.mxu0 0
        %476 = vmatpush1.bf16.msra.mxu0 %v440
        %477 = vmatprep.subr.bf16.mxu0 0
        %478 = vmatpush1.bf16.msra.mxu0 %v441
        %479 = vmatprep.subr.bf16.mxu0 0
        %480 = vmatpush1.bf16.msra.mxu0 %v442
        %481 = vmatprep.subr.bf16.mxu0 0
        %482 = vmatpush1.bf16.msra.mxu0 %v443
        %483 = vmatprep.subr.bf16.mxu0 0
        %484 = vmatpush1.bf16.msra.mxu0 %v444
        %485 = vmatprep.subr.bf16.mxu0 0
        %486 = vmatpush1.bf16.msra.mxu0 %v445
        %487 = vmatprep.subr.bf16.mxu0 0
        %488 = vmatpush1.bf16.msra.mxu0 %v446
        %489 = vmatprep.subr.bf16.mxu0 0
        %490 = vmatpush1.bf16.msra.mxu0 %v447
        %491 = vmatprep.subr.bf16.mxu0 0
        %492 = vmatpush1.bf16.msra.mxu0 %v448
        %493 = vmatprep.subr.bf16.mxu0 0
        %494 = vmatpush1.bf16.msra.mxu0 %v449
        %495 = vmatprep.subr.bf16.mxu0 0
        %496 = vmatpush1.bf16.msra.mxu0 %v450
        %497 = vmatprep.subr.bf16.mxu0 0
        %498 = vmatpush1.bf16.msra.mxu0 %v451
        %499 = vmatprep.subr.bf16.mxu0 0
        %500 = vmatpush1.bf16.msra.mxu0 %v452
        %501 = vmatprep.mubr.bf16.mxu0 %v370
        %502 = vmatmul.mubr.bf16.gmra.mrb[0].mxu0 %v369
        %v503 = vpop.f32.mrb[0].mxu0
        %v504 = vadd.f32 %v364, %v503
        %v505 = vpop.f32.mrb[0].mxu0
        %v506 = vpop.f32.mrb[0].mxu0
        %v507 = vpop.f32.mrb[0].mxu0
        %508 = vdwg.mxu0
        %v509 = vmax.f32 %v504, 0.0
        %v510 = vpack.c.bf16 %v509, %v509
        %v512 = vunpack.c.l.b16 %v510
        %v513 = vpack.c.b16 %v512, %v512
        %514 = vrot.lane.b32.xlu0 %v513, 64
        %v515 = vpop.permute.xlu0 %514
        %v516 = vrot.slane %v515, 4
        %v517 = vsel %vm290, %v516, %v515
        %519 = vst.msk [vmem:[#allocation2] sm:$0xff] %vm295, %v517
        %v521 = vshrl.u32 %v513, 16
        %v523 = vrot.slane %v521, 7
        %v524 = vshll.u32 %v513, 16
        %v526 = vor.u32 %v523, %v524
        %527 = vrot.lane.b32.xlu0 %v526, 64
        %v528 = vpop.permute.xlu0 %527
        %v530 = vld [vmem:[#allocation2] sm:$0xf]
        %v531 = vsel %vm309, %v528, %v530
        %532 = vst [vmem:[#allocation2] sm:$0xf] %v531
        %v533 = vrot.slane %v521, 4
        %v534 = vrot.slane %v524, 5
        %v535 = vor.u32 %v533, %v534
        %v536 = vrot.slane %v535, 4
        %537 = vrot.lane.b32.xlu0 %v536, 64
        %v538 = vpop.permute.xlu0 %537
        %v540 = vld [vmem:[#allocation2 + $0x4] sm:$0xf]
        %v541 = vsel %vm322, %v538, %v540
        %542 = vst [vmem:[#allocation2 + $0x4] sm:$0xf] %v541
        %v543 = vld [vmem:[#allocation2] sm:$0xff]
        %v544 = vld [vmem:[#allocation8] sm:$0xf]
        %v545 = vld [vmem:[#allocation8 + $0x4] sm:$0xf]
        %v546 = vld [vmem:[#allocation8 + $0x8] sm:$0xf]
        %v547 = vld [vmem:[#allocation8 + $0xc] sm:$0xf]
        %v548 = vld [vmem:[#allocation8 + $0x10] sm:$0xf]
        %v549 = vld [vmem:[#allocation8 + $0x14] sm:$0xf]
        %v550 = vld [vmem:[#allocation8 + $0x18] sm:$0xf]
        %v551 = vld [vmem:[#allocation8 + $0x1c] sm:$0xf]
        %v552 = vld [vmem:[#allocation8 + $0x20] sm:$0xf]
        %v553 = vld [vmem:[#allocation8 + $0x24] sm:$0xf]
        %v554 = vld [vmem:[#allocation8 + $0x28] sm:$0xf]
        %v555 = vld [vmem:[#allocation8 + $0x2c] sm:$0xf]
        %v556 = vld [vmem:[#allocation8 + $0x30] sm:$0xf]
        %v557 = vld [vmem:[#allocation8 + $0x34] sm:$0xf]
        %v558 = vld [vmem:[#allocation8 + $0x38] sm:$0xf]
        %v559 = vld [vmem:[#allocation8 + $0x3c] sm:$0xf]
        %v560 = vld [vmem:[#allocation8 + $0x40] sm:$0xf]
        %v561 = vld [vmem:[#allocation8 + $0x44] sm:$0xf]
        %v562 = vld [vmem:[#allocation8 + $0x48] sm:$0xf]
        %v563 = vld [vmem:[#allocation8 + $0x4c] sm:$0xf]
        %v564 = vld [vmem:[#allocation8 + $0x50] sm:$0xf]
        %v565 = vld [vmem:[#allocation8 + $0x54] sm:$0xf]
        %v566 = vld [vmem:[#allocation8 + $0x58] sm:$0xf]
        %v567 = vld [vmem:[#allocation8 + $0x5c] sm:$0xf]
        %v568 = vld [vmem:[#allocation8 + $0x60] sm:$0xf]
        %v569 = vld [vmem:[#allocation8 + $0x64] sm:$0xf]
        %v570 = vld [vmem:[#allocation8 + $0x68] sm:$0xf]
        %v571 = vld [vmem:[#allocation8 + $0x6c] sm:$0xf]
        %v572 = vld [vmem:[#allocation8 + $0x70] sm:$0xf]
        %v573 = vld [vmem:[#allocation8 + $0x74] sm:$0xf]
        %v574 = vld [vmem:[#allocation8 + $0x78] sm:$0xf]
        %v575 = vld [vmem:[#allocation8 + $0x7c] sm:$0xf]
        %v576 = vld [vmem:[%s4] sm:$0x1]
        %v578 = vlaneseq
        %v579 = vshrl.u32 %v578, 7
        %v580 = vsub.s32 0, %v579
        %v581 = vrot.slane %v576, %v580
        %v584 = vunpack.c.l.b16 %v543
        %v585 = vunpack.c.h.b16 %v543
        %v586 = vpack.c.b16 %v584, %v584
        %v587 = vpack.c.b16 %v585, %v585
        %v622 = vunpack.c.l.b16 %v544
        %v623 = vunpack.c.l.b16 %v545
        %v624 = vunpack.c.l.b16 %v546
        %v625 = vunpack.c.l.b16 %v547
        %v626 = vunpack.c.l.b16 %v548
        %v627 = vunpack.c.l.b16 %v549
        %v628 = vunpack.c.l.b16 %v550
        %v629 = vunpack.c.l.b16 %v551
        %v630 = vunpack.c.l.b16 %v552
        %v631 = vunpack.c.l.b16 %v553
        %v632 = vunpack.c.l.b16 %v554
        %v633 = vunpack.c.l.b16 %v555
        %v634 = vunpack.c.l.b16 %v556
        %v635 = vunpack.c.l.b16 %v557
        %v636 = vunpack.c.l.b16 %v558
        %v637 = vunpack.c.l.b16 %v559
        %v638 = vunpack.c.l.b16 %v560
        %v639 = vunpack.c.l.b16 %v561
        %v640 = vunpack.c.l.b16 %v562
        %v641 = vunpack.c.l.b16 %v563
        %v642 = vunpack.c.l.b16 %v564
        %v643 = vunpack.c.l.b16 %v565
        %v644 = vunpack.c.l.b16 %v566
        %v645 = vunpack.c.l.b16 %v567
        %v646 = vunpack.c.l.b16 %v568
        %v647 = vunpack.c.l.b16 %v569
        %v648 = vunpack.c.l.b16 %v570
        %v649 = vunpack.c.l.b16 %v571
        %v650 = vunpack.c.l.b16 %v572
        %v651 = vunpack.c.l.b16 %v573
        %v652 = vunpack.c.l.b16 %v574
        %v653 = vunpack.c.l.b16 %v575
        %v654 = vpack.c.b16 %v623, %v622
        %v655 = vpack.c.b16 %v625, %v624
        %v656 = vpack.c.b16 %v627, %v626
        %v657 = vpack.c.b16 %v629, %v628
        %v658 = vpack.c.b16 %v631, %v630
        %v659 = vpack.c.b16 %v633, %v632
        %v660 = vpack.c.b16 %v635, %v634
        %v661 = vpack.c.b16 %v637, %v636
        %v662 = vpack.c.b16 %v639, %v638
        %v663 = vpack.c.b16 %v641, %v640
        %v664 = vpack.c.b16 %v643, %v642
        %v665 = vpack.c.b16 %v645, %v644
        %v666 = vpack.c.b16 %v647, %v646
        %v667 = vpack.c.b16 %v649, %v648
        %v668 = vpack.c.b16 %v651, %v650
        %v669 = vpack.c.b16 %v653, %v652
        %686 = vmatprep.subr.bf16.mxu0 0
        %687 = vmatpush1.bf16.msra.mxu0 %v654
        %688 = vmatprep.subr.bf16.mxu0 0
        %689 = vmatpush1.bf16.msra.mxu0 %v655
        %690 = vmatprep.subr.bf16.mxu0 0
        %691 = vmatpush1.bf16.msra.mxu0 %v656
        %692 = vmatprep.subr.bf16.mxu0 0
        %693 = vmatpush1.bf16.msra.mxu0 %v657
        %694 = vmatprep.subr.bf16.mxu0 0
        %695 = vmatpush1.bf16.msra.mxu0 %v658
        %696 = vmatprep.subr.bf16.mxu0 0
        %697 = vmatpush1.bf16.msra.mxu0 %v659
        %698 = vmatprep.subr.bf16.mxu0 0
        %699 = vmatpush1.bf16.msra.mxu0 %v660
        %700 = vmatprep.subr.bf16.mxu0 0
        %701 = vmatpush1.bf16.msra.mxu0 %v661
        %702 = vmatprep.subr.bf16.mxu0 0
        %703 = vmatpush1.bf16.msra.mxu0 %v662
        %704 = vmatprep.subr.bf16.mxu0 0
        %705 = vmatpush1.bf16.msra.mxu0 %v663
        %706 = vmatprep.subr.bf16.mxu0 0
        %707 = vmatpush1.bf16.msra.mxu0 %v664
        %708 = vmatprep.subr.bf16.mxu0 0
        %709 = vmatpush1.bf16.msra.mxu0 %v665
        %710 = vmatprep.subr.bf16.mxu0 0
        %711 = vmatpush1.bf16.msra.mxu0 %v666
        %712 = vmatprep.subr.bf16.mxu0 0
        %713 = vmatpush1.bf16.msra.mxu0 %v667
        %714 = vmatprep.subr.bf16.mxu0 0
        %715 = vmatpush1.bf16.msra.mxu0 %v668
        %716 = vmatprep.subr.bf16.mxu0 0
        %717 = vmatpush1.bf16.msra.mxu0 %v669
        %718 = vmatprep.mubr.bf16.mxu0 %v587
        %719 = vmatmul.mubr.bf16.gmra.mrb[0].mxu0 %v586
        %v720 = vpop.f32.mrb[0].mxu0
        %v721 = vadd.f32 %v581, %v720
        %v722 = vpop.f32.mrb[0].mxu0
        %v723 = vpop.f32.mrb[0].mxu0
        %v724 = vpop.f32.mrb[0].mxu0
        %725 = vdwg.mxu0
        %v726 = vadd.f32 %v721, %v270
        %v727 = vmax.f32 %v726, 0.0
        %728 = vst [vmem:[%s268] sm:$0xff] %v727
        %s729 = sand.u32 %s141, 1
        %s730 = scalar_lea.sflag [#allocation5], %s729
        %s731 = sand.u32 %s141, 1
        %s732 = smul.addr %s731, 8
        %s733 = scalar_lea.vmem [#allocation9], %s732
        // Predicated region
        $region53: #{tpu_custom_call.1} parent=39 // pred_check
          %p734 = pneg %p151
        $region54: #{tpu_custom_call.1} parent=39 // pred_check_branch
          %736 = sbr.rel (%p734) target = $region56
        $region55: #{tpu_custom_call.1} parent=39 // pred_region
          %s738 = ssub.s32 128, 128
          %739 = vsyncadd %s730, %s738
          %s740 = smul.addr %s23, 128
          %s741 = scalar_lea.hbm %s5, %s740
          %s743 = sshll.u32 %s733, 4
          %s744 = int_to_ptr.vmem [resolvable:$true] %s743
          %746 = dma.vmem_to_hbm [thread:$0]  %s744, 128, %s741, %s730
        $region56: #{tpu_custom_call.1} parent=39 // pred_fallthru
          _
      $region40: #{tpu_custom_call.1} parent=5 // pred_fallthru
        _
      %p747 = scmp.le.s32.totalorder 2, %s18
      // Predicated region
      $region57: #{tpu_custom_call.1} parent=5 // pred_check
        %p748 = pneg %p747
      $region58: #{tpu_custom_call.1} parent=5 // pred_check_branch
        %750 = sbr.rel (%p748) target = $region60
      $region59: #{tpu_custom_call.1} parent=5 // pred_region
        %s751 = ssub.s32 %s18, 2
        // Predicated region
        $region61: #{tpu_custom_call.1} parent=59 // pred_check
          %p752 = pneg %p157
        $region62: #{tpu_custom_call.1} parent=59 // pred_check_branch
          %754 = sbr.rel (%p752) target = $region64
        $region63: #{tpu_custom_call.1} parent=59 // pred_region
          %s755 = sand.u32 %s142, 1
          %s756 = scalar_lea.sflag [#allocation5], %s755
          %s757 = sand.u32 %s142, 1
          %s758 = smul.addr %s757, 8
          %s759 = scalar_lea.vmem [#allocation9], %s758
          %760 = dma.done %s756, 128
        $region64: #{tpu_custom_call.1} parent=59 // pred_fallthru
          _
      $region60: #{tpu_custom_call.1} parent=5 // pred_fallthru
        _
    $region6: #{tpu_custom_call.1} parent=1 // loop_footer
      %s22 = sadd.s32 1, %s18
    $region7: #{tpu_custom_call.1} parent=1 // loop_footer_branch
      %17 = sbr.rel target = $region3
    $region8: #{tpu_custom_call.1} parent=1 // loop_exit
      _
    %761 = vsyncpa [#allocation4], 1
    %s762 = scalar_lea.sflag [#allocation4], 1
    %763 = vsyncpa %s762, 1
    %764 = vsyncpa [#allocation7], 1
    %765 = vsyncpa [#allocation5], 1
    %s766 = scalar_lea.sflag [#allocation5], 1
    %767 = vsyncpa %s766, 1

</llo_original>
